<compile_context>
chip_gen: v5e
topology: v5e:2x2
jax: 0.10.0
libtpu: 0.0.40
codegen_flags: <defaults>
</compile_context>

<pallas_src>
import functools

import jax
import jax.numpy as jnp
from jax.experimental import pallas as pl
from jax.experimental.pallas import tpu as pltpu


def _graphsage_kernel(x_src_ref, x_tile_ref, idx_ref, w1_ref, b1_ref,
                      w2x_ref, w2m_ref, b2_ref, o_ref, *, num_nodes,
                      num_neighbors):
    # x_src_ref : (1, C, N)    compute dtype  full node features (gather source)
    # x_tile_ref: (1, C, TN)   compute dtype  this tile's own node features
    # idx_ref   : (1, K, TN)   int32          neighbour ids (lane dim = nodes)
    # w1_ref    : (C, C)       compute dtype  nn1 1x1-conv weight (out, in)
    # b1_ref    : (C, 1)       f32
    # w2x_ref   : (OUT, C)     compute dtype  nn2 weight columns acting on x
    # w2m_ref   : (OUT, C)     compute dtype  nn2 weight columns acting on x_j
    # b2_ref    : (OUT, 1)     f32
    # o_ref     : (1, OUT, TN) f32
    x_src = x_src_ref[0]                                    # (C, N)
    x_tile = x_tile_ref[0]                                  # (C, TN)
    w1 = w1_ref[...]                                        # (C, C)
    cdt = x_src.dtype
    c = x_src.shape[0]
    tn = x_tile.shape[-1]

    # Hoisted out of the k loop (JAX does not CSE broadcasts / iotas).
    node_iota = jax.lax.broadcasted_iota(jnp.int32, (num_nodes, tn), 0)  # (N, TN)
    b1b = jnp.broadcast_to(b1_ref[...], (c, tn))                         # (C, TN) f32

    # Streamed per-neighbour-slot gather + nn1 + running max.  num_neighbors is
    # small and static, so this Python loop is fully unrolled at trace time
    # (equivalent to lax.fori_loop(..., unroll=True)); all slices are static.
    m = jnp.full((c, tn), -jnp.inf, dtype=jnp.float32)
    for kk in range(num_neighbors):
        idx_k = idx_ref[0, kk:kk + 1, :]                    # (1, TN) lane vector
        onehot = (node_iota == idx_k).astype(cdt)           # (N, TN)
        # batched_index_select for slot k as one MXU matmul: g[:, r] = x[:, idx_k[r]]
        # TODO(synk): for N >> C a scalar-prefetch-driven DMA row gather would
        # avoid the O(N*TN) one-hot matmul per slot entirely.
        g = jnp.dot(x_src, onehot, preferred_element_type=jnp.float32)      # (C, TN)
        h = jnp.dot(w1, g.astype(cdt), preferred_element_type=jnp.float32)  # (C, TN)
        h = jnp.maximum(h + b1b, 0.0)                       # nn1: ReLU(W1 x_j + b1)
        m = jnp.maximum(m, h)                               # max over neighbours

    # nn2 on cat([x, x_j], dim=1): concat split into two matmuls (no 2C buffer).
    out = jnp.dot(w2x_ref[...], x_tile, preferred_element_type=jnp.float32)
    out = out + jnp.dot(w2m_ref[...], m.astype(cdt),
                        preferred_element_type=jnp.float32)
    out = jnp.maximum(out + b2_ref[...], 0.0)               # + b2, ReLU
    o_ref[0] = out.astype(o_ref.dtype)


def _pick_node_tile(n):
    """Lane-aligned node tile (multiple of 128) or the full axis if small/odd."""
    for tn in (256, 128):
        if n % tn == 0:
            return tn
    return n


def graphsage_forward(x_nchw, edge_index, params, *,
                      compute_dtype=jnp.bfloat16, tile_n=None):
    """x_nchw: (B, C, N, 1); edge_index: (2, B, N, K) int -> (B, OUT, N, 1) f32."""
    w1, b1, w2, b2 = params
    B, C, N, _ = x_nchw.shape
    K = edge_index.shape[-1]
    OUT = w2.shape[0]

    TN = tile_n if tile_n is not None else _pick_node_tile(N)
    assert N % TN == 0, (N, TN)

    # Layout glue only: NCHW -> (B, C, N); neighbour ids -> (B, K, N) so the
    # node axis sits on lanes in both the index block and the output block.
    x_cn = x_nchw[..., 0].astype(compute_dtype)                       # (B, C, N)
    idx_bkn = jnp.transpose(edge_index[0], (0, 2, 1)).astype(jnp.int32)  # (B, K, N)

    w1c = w1.astype(compute_dtype)                                    # (C, C)
    w2x = w2[:, :C].astype(compute_dtype)                             # (OUT, C)
    w2m = w2[:, C:].astype(compute_dtype)                             # (OUT, C)
    b1c = b1.reshape(C, 1).astype(jnp.float32)
    b2c = b2.reshape(OUT, 1).astype(jnp.float32)

    kernel = functools.partial(_graphsage_kernel, num_nodes=N, num_neighbors=K)
    out = pl.pallas_call(
        kernel,
        out_shape=jax.ShapeDtypeStruct((B, OUT, N), jnp.float32),
        grid=(B, N // TN),
        in_specs=[
            # full-N gather source: block index constant across the inner tile
            # axis, so Pallas does not re-DMA it between consecutive steps.
            pl.BlockSpec((1, C, N), lambda b, i: (b, 0, 0)),
            pl.BlockSpec((1, C, TN), lambda b, i: (b, 0, i)),   # this tile's x
            pl.BlockSpec((1, K, TN), lambda b, i: (b, 0, i)),   # neighbour ids
            pl.BlockSpec((C, C), lambda b, i: (0, 0)),          # w1
            pl.BlockSpec((C, 1), lambda b, i: (0, 0)),          # b1
            pl.BlockSpec((OUT, C), lambda b, i: (0, 0)),        # w2[:, :C]
            pl.BlockSpec((OUT, C), lambda b, i: (0, 0)),        # w2[:, C:]
            pl.BlockSpec((OUT, 1), lambda b, i: (0, 0)),        # b2
        ],
        out_specs=pl.BlockSpec((1, OUT, TN), lambda b, i: (b, 0, i)),
        compiler_params=pltpu.CompilerParams(
            dimension_semantics=("parallel", "parallel")),
    )(x_cn, x_cn, idx_bkn, w1c, b1c, w2x, w2m, b2c)

    # output is already channels-major: (B, OUT, N) -> PyTorch NCHW (B, OUT, N, 1)
    return out[..., None]


def _reference(x_nchw, edge_index, params, cast_dtype=None):
    """Pure-JAX reference mirroring the PyTorch forward (f32 math).

    If cast_dtype is given, x and the conv weights are rounded through that
    dtype first (so the bf16 kernel can be compared at tight-ish tolerance).
    """
    w1, b1, w2, b2 = params
    if cast_dtype is not None:
        rnd = lambda a: a.astype(cast_dtype).astype(jnp.float32)
        x_nchw, w1, w2 = rnd(x_nchw), rnd(w1), rnd(w2)
    xt = jnp.transpose(x_nchw[..., 0], (0, 2, 1))                   # (B, N, C)
    idx = edge_index[0]                                             # (B, N, K)
    x_j = jax.vmap(lambda xb, ib: xb[ib])(xt, idx)                  # (B, N, K, C)
    h = jax.nn.relu(
        jnp.einsum('bnkc,dc->bnkd', x_j, w1, precision='highest') + b1)
    m = jnp.max(h, axis=2)                                          # (B, N, C)
    cat = jnp.concatenate([xt, m], axis=-1)                         # (B, N, 2C)
    out = jax.nn.relu(
        jnp.einsum('bnc,dc->bnd', cat, w2, precision='highest') + b2)
    return jnp.transpose(out, (0, 2, 1))[..., None]                 # (B, OUT, N, 1)


if __name__ == "__main__":
    B, C, N, K, OUT = 2, 4, 16, 8, 8

    key = jax.random.PRNGKey(0)
    kx, ke, k1, k2, k3, k4 = jax.random.split(key, 6)

    # inputs (PyTorch layout): x is NCHW with W=1, edge_index is (2, B, N, K)
    x = jax.random.normal(kx, (B, C, N, 1), dtype=jnp.float32)
    edge_index = jax.random.randint(ke, (2, B, N, K), 0, N, dtype=jnp.int32)

    # deterministic parameter init (Conv2d 1x1 weights squeezed to 2-D)
    w1 = 0.5 * jax.random.normal(k1, (C, C), dtype=jnp.float32)          # nn1 weight
    b1 = 0.1 * jax.random.normal(k2, (C,), dtype=jnp.float32)            # nn1 bias
    w2 = 0.5 * jax.random.normal(k3, (OUT, 2 * C), dtype=jnp.float32)    # nn2 weight
    b2 = 0.1 * jax.random.normal(k4, (OUT,), dtype=jnp.float32)          # nn2 bias
    params = (w1, b1, w2, b2)

    # 1) exactness check: f32 compute path vs f32 reference (tight tolerance)
    out_f32 = jax.block_until_ready(
        graphsage_forward(x, edge_index, params, compute_dtype=jnp.float32))
    ref_f32 = _reference(x, edge_index, params)
    assert out_f32.shape == (B, OUT, N, 1), out_f32.shape
    assert jnp.allclose(out_f32, ref_f32, atol=1e-4, rtol=1e-4), \
        "f32 kernel mismatch vs reference"

    # 2) production path: bf16 operands, f32 MXU accumulation
    out_bf16 = jax.block_until_ready(
        graphsage_forward(x, edge_index, params, compute_dtype=jnp.bfloat16))
    ref_bf16 = _reference(x, edge_index, params, cast_dtype=jnp.bfloat16)
    assert out_bf16.shape == (B, OUT, N, 1), out_bf16.shape
    assert jnp.allclose(out_bf16, ref_bf16, atol=5e-2, rtol=5e-2), \
        "bf16 kernel mismatch vs bf16-rounded reference"

    print("KERNEL_OK")
</pallas_src>

<mosaic_0001>
module attributes {stable_mosaic.version = 11 : i64} {
  func.func @_graphsage_kernel(%arg0: i32, %arg1: i32, %arg2: memref<1x4x16xf32, #tpu.memory_space<vmem>>, %arg3: memref<1x4x16xf32, #tpu.memory_space<vmem>>, %arg4: memref<1x8x16xi32, #tpu.memory_space<vmem>>, %arg5: memref<4x4xf32, #tpu.memory_space<vmem>>, %arg6: memref<4x1xf32, #tpu.memory_space<vmem>>, %arg7: memref<8x4xf32, #tpu.memory_space<vmem>>, %arg8: memref<8x4xf32, #tpu.memory_space<vmem>>, %arg9: memref<8x1xf32, #tpu.memory_space<vmem>>, %arg10: memref<1x8x16xf32, #tpu.memory_space<vmem>>) attributes {dimension_semantics = [#tpu.dimension_semantics<parallel>, #tpu.dimension_semantics<parallel>], iteration_bounds = array<i64: 2, 1>, scalar_prefetch = 0 : i64, scratch_operands = 0 : i64, tpu.core_type = #tpu.core_type<tc>, window_params = [{transform_indices = @transform_0, window_bounds = array<i64: 1, 4, 16>}, {transform_indices = @transform_1, window_bounds = array<i64: 1, 4, 16>}, {transform_indices = @transform_2, window_bounds = array<i64: 1, 8, 16>}, {pipeline_mode = #tpu.pipeline_mode<synchronous>, transform_indices = @transform_3, window_bounds = array<i64: 4, 4>}, {pipeline_mode = #tpu.pipeline_mode<synchronous>, transform_indices = @transform_4, window_bounds = array<i64: 4, 1>}, {pipeline_mode = #tpu.pipeline_mode<synchronous>, transform_indices = @transform_5, window_bounds = array<i64: 8, 4>}, {pipeline_mode = #tpu.pipeline_mode<synchronous>, transform_indices = @transform_6, window_bounds = array<i64: 8, 4>}, {pipeline_mode = #tpu.pipeline_mode<synchronous>, transform_indices = @transform_7, window_bounds = array<i64: 8, 1>}, {transform_indices = @transform_8, window_bounds = array<i64: 1, 8, 16>}]} {
    %c0 = arith.constant 0 : index
    %c0_0 = arith.constant 0 : index
    %c0_1 = arith.constant 0 : index
    %0 = vector.load %arg2[%c0, %c0_0, %c0_1] : memref<1x4x16xf32, #tpu.memory_space<vmem>>, vector<1x4x16xf32>
    %1 = vector.shape_cast %0 : vector<1x4x16xf32> to vector<4x16xf32>
    %c0_2 = arith.constant 0 : index
    %c0_3 = arith.constant 0 : index
    %c0_4 = arith.constant 0 : index
    %2 = vector.load %arg3[%c0_2, %c0_3, %c0_4] : memref<1x4x16xf32, #tpu.memory_space<vmem>>, vector<1x4x16xf32>
    %3 = vector.shape_cast %2 : vector<1x4x16xf32> to vector<4x16xf32>
    %c0_5 = arith.constant 0 : index
    %c0_6 = arith.constant 0 : index
    %4 = vector.load %arg5[%c0_5, %c0_6] : memref<4x4xf32, #tpu.memory_space<vmem>>, vector<4x4xf32>
    %5 = tpu.iota {dimensions = array<i32: 0>} : vector<16x16xi32>
    %c0_7 = arith.constant 0 : index
    %c0_8 = arith.constant 0 : index
    %6 = vector.load %arg6[%c0_7, %c0_8] : memref<4x1xf32, #tpu.memory_space<vmem>>, vector<4x1xf32>
    %7 = vector.shape_cast %6 : vector<4x1xf32> to vector<4x1xf32>
    %8 = vector.broadcast %7 : vector<4x1xf32> to vector<4x16xf32>
    %cst = arith.constant 0xFF800000 : f32
    %9 = vector.broadcast %cst : f32 to vector<4x16xf32>
    %c0_9 = arith.constant 0 : index
    %c0_10 = arith.constant 0 : index
    %c0_11 = arith.constant 0 : index
    %10 = vector.load %arg4[%c0_9, %c0_10, %c0_11] : memref<1x8x16xi32, #tpu.memory_space<vmem>>, vector<1x1x16xi32>
    %11 = vector.shape_cast %10 : vector<1x1x16xi32> to vector<1x16xi32>
    %12 = vector.broadcast %11 : vector<1x16xi32> to vector<16x16xi32>
    %13 = arith.cmpi eq, %5, %12 : vector<16x16xi32>
    %14 = arith.extui %13 : vector<16x16xi1> to vector<16x16xi32>
    %15 = arith.sitofp %14 : vector<16x16xi32> to vector<16x16xf32>
    %cst_12 = arith.constant dense<0.000000e+00> : vector<4x16xf32>
    %16 = tpu.matmul %1, %15, %cst_12 {dimension_numbers = #tpu.dot_dimension_numbers<[1], [0], [0], [1], [0, 0, 1, 1], [], []>} : vector<4x16xf32>, vector<16x16xf32>, vector<4x16xf32> -> vector<4x16xf32>
    %cst_13 = arith.constant dense<0.000000e+00> : vector<4x16xf32>
    %17 = tpu.matmul %4, %16, %cst_13 {dimension_numbers = #tpu.dot_dimension_numbers<[1], [0], [0], [1], [0, 0, 1, 1], [], []>} : vector<4x4xf32>, vector<4x16xf32>, vector<4x16xf32> -> vector<4x16xf32>
    %18 = arith.addf %17, %8 : vector<4x16xf32>
    %cst_14 = arith.constant 0.000000e+00 : f32
    %19 = vector.broadcast %cst_14 : f32 to vector<4x16xf32>
    %20 = arith.maximumf %18, %19 : vector<4x16xf32>
    %21 = arith.maximumf %9, %20 : vector<4x16xf32>
    %c0_15 = arith.constant 0 : index
    %c1 = arith.constant 1 : index
    %c0_16 = arith.constant 0 : index
    %22 = vector.load %arg4[%c0_15, %c1, %c0_16] : memref<1x8x16xi32, #tpu.memory_space<vmem>>, vector<1x1x16xi32>
    %23 = vector.shape_cast %22 : vector<1x1x16xi32> to vector<1x16xi32>
    %24 = vector.broadcast %23 : vector<1x16xi32> to vector<16x16xi32>
    %25 = arith.cmpi eq, %5, %24 : vector<16x16xi32>
    %26 = arith.extui %25 : vector<16x16xi1> to vector<16x16xi32>
    %27 = arith.sitofp %26 : vector<16x16xi32> to vector<16x16xf32>
    %cst_17 = arith.constant dense<0.000000e+00> : vector<4x16xf32>
    %28 = tpu.matmul %1, %27, %cst_17 {dimension_numbers = #tpu.dot_dimension_numbers<[1], [0], [0], [1], [0, 0, 1, 1], [], []>} : vector<4x16xf32>, vector<16x16xf32>, vector<4x16xf32> -> vector<4x16xf32>
    %cst_18 = arith.constant dense<0.000000e+00> : vector<4x16xf32>
    %29 = tpu.matmul %4, %28, %cst_18 {dimension_numbers = #tpu.dot_dimension_numbers<[1], [0], [0], [1], [0, 0, 1, 1], [], []>} : vector<4x4xf32>, vector<4x16xf32>, vector<4x16xf32> -> vector<4x16xf32>
    %30 = arith.addf %29, %8 : vector<4x16xf32>
    %cst_19 = arith.constant 0.000000e+00 : f32
    %31 = vector.broadcast %cst_19 : f32 to vector<4x16xf32>
    %32 = arith.maximumf %30, %31 : vector<4x16xf32>
    %33 = arith.maximumf %21, %32 : vector<4x16xf32>
    %c0_20 = arith.constant 0 : index
    %c2 = arith.constant 2 : index
    %c0_21 = arith.constant 0 : index
    %34 = vector.load %arg4[%c0_20, %c2, %c0_21] : memref<1x8x16xi32, #tpu.memory_space<vmem>>, vector<1x1x16xi32>
    %35 = vector.shape_cast %34 : vector<1x1x16xi32> to vector<1x16xi32>
    %36 = vector.broadcast %35 : vector<1x16xi32> to vector<16x16xi32>
    %37 = arith.cmpi eq, %5, %36 : vector<16x16xi32>
    %38 = arith.extui %37 : vector<16x16xi1> to vector<16x16xi32>
    %39 = arith.sitofp %38 : vector<16x16xi32> to vector<16x16xf32>
    %cst_22 = arith.constant dense<0.000000e+00> : vector<4x16xf32>
    %40 = tpu.matmul %1, %39, %cst_22 {dimension_numbers = #tpu.dot_dimension_numbers<[1], [0], [0], [1], [0, 0, 1, 1], [], []>} : vector<4x16xf32>, vector<16x16xf32>, vector<4x16xf32> -> vector<4x16xf32>
    %cst_23 = arith.constant dense<0.000000e+00> : vector<4x16xf32>
    %41 = tpu.matmul %4, %40, %cst_23 {dimension_numbers = #tpu.dot_dimension_numbers<[1], [0], [0], [1], [0, 0, 1, 1], [], []>} : vector<4x4xf32>, vector<4x16xf32>, vector<4x16xf32> -> vector<4x16xf32>
    %42 = arith.addf %41, %8 : vector<4x16xf32>
    %cst_24 = arith.constant 0.000000e+00 : f32
    %43 = vector.broadcast %cst_24 : f32 to vector<4x16xf32>
    %44 = arith.maximumf %42, %43 : vector<4x16xf32>
    %45 = arith.maximumf %33, %44 : vector<4x16xf32>
    %c0_25 = arith.constant 0 : index
    %c3 = arith.constant 3 : index
    %c0_26 = arith.constant 0 : index
    %46 = vector.load %arg4[%c0_25, %c3, %c0_26] : memref<1x8x16xi32, #tpu.memory_space<vmem>>, vector<1x1x16xi32>
    %47 = vector.shape_cast %46 : vector<1x1x16xi32> to vector<1x16xi32>
    %48 = vector.broadcast %47 : vector<1x16xi32> to vector<16x16xi32>
    %49 = arith.cmpi eq, %5, %48 : vector<16x16xi32>
    %50 = arith.extui %49 : vector<16x16xi1> to vector<16x16xi32>
    %51 = arith.sitofp %50 : vector<16x16xi32> to vector<16x16xf32>
    %cst_27 = arith.constant dense<0.000000e+00> : vector<4x16xf32>
    %52 = tpu.matmul %1, %51, %cst_27 {dimension_numbers = #tpu.dot_dimension_numbers<[1], [0], [0], [1], [0, 0, 1, 1], [], []>} : vector<4x16xf32>, vector<16x16xf32>, vector<4x16xf32> -> vector<4x16xf32>
    %cst_28 = arith.constant dense<0.000000e+00> : vector<4x16xf32>
    %53 = tpu.matmul %4, %52, %cst_28 {dimension_numbers = #tpu.dot_dimension_numbers<[1], [0], [0], [1], [0, 0, 1, 1], [], []>} : vector<4x4xf32>, vector<4x16xf32>, vector<4x16xf32> -> vector<4x16xf32>
    %54 = arith.addf %53, %8 : vector<4x16xf32>
    %cst_29 = arith.constant 0.000000e+00 : f32
    %55 = vector.broadcast %cst_29 : f32 to vector<4x16xf32>
    %56 = arith.maximumf %54, %55 : vector<4x16xf32>
    %57 = arith.maximumf %45, %56 : vector<4x16xf32>
    %c0_30 = arith.constant 0 : index
    %c4 = arith.constant 4 : index
    %c0_31 = arith.constant 0 : index
    %58 = vector.load %arg4[%c0_30, %c4, %c0_31] : memref<1x8x16xi32, #tpu.memory_space<vmem>>, vector<1x1x16xi32>
    %59 = vector.shape_cast %58 : vector<1x1x16xi32> to vector<1x16xi32>
    %60 = vector.broadcast %59 : vector<1x16xi32> to vector<16x16xi32>
    %61 = arith.cmpi eq, %5, %60 : vector<16x16xi32>
    %62 = arith.extui %61 : vector<16x16xi1> to vector<16x16xi32>
    %63 = arith.sitofp %62 : vector<16x16xi32> to vector<16x16xf32>
    %cst_32 = arith.constant dense<0.000000e+00> : vector<4x16xf32>
    %64 = tpu.matmul %1, %63, %cst_32 {dimension_numbers = #tpu.dot_dimension_numbers<[1], [0], [0], [1], [0, 0, 1, 1], [], []>} : vector<4x16xf32>, vector<16x16xf32>, vector<4x16xf32> -> vector<4x16xf32>
    %cst_33 = arith.constant dense<0.000000e+00> : vector<4x16xf32>
    %65 = tpu.matmul %4, %64, %cst_33 {dimension_numbers = #tpu.dot_dimension_numbers<[1], [0], [0], [1], [0, 0, 1, 1], [], []>} : vector<4x4xf32>, vector<4x16xf32>, vector<4x16xf32> -> vector<4x16xf32>
    %66 = arith.addf %65, %8 : vector<4x16xf32>
    %cst_34 = arith.constant 0.000000e+00 : f32
    %67 = vector.broadcast %cst_34 : f32 to vector<4x16xf32>
    %68 = arith.maximumf %66, %67 : vector<4x16xf32>
    %69 = arith.maximumf %57, %68 : vector<4x16xf32>
    %c0_35 = arith.constant 0 : index
    %c5 = arith.constant 5 : index
    %c0_36 = arith.constant 0 : index
    %70 = vector.load %arg4[%c0_35, %c5, %c0_36] : memref<1x8x16xi32, #tpu.memory_space<vmem>>, vector<1x1x16xi32>
    %71 = vector.shape_cast %70 : vector<1x1x16xi32> to vector<1x16xi32>
    %72 = vector.broadcast %71 : vector<1x16xi32> to vector<16x16xi32>
    %73 = arith.cmpi eq, %5, %72 : vector<16x16xi32>
    %74 = arith.extui %73 : vector<16x16xi1> to vector<16x16xi32>
    %75 = arith.sitofp %74 : vector<16x16xi32> to vector<16x16xf32>
    %cst_37 = arith.constant dense<0.000000e+00> : vector<4x16xf32>
    %76 = tpu.matmul %1, %75, %cst_37 {dimension_numbers = #tpu.dot_dimension_numbers<[1], [0], [0], [1], [0, 0, 1, 1], [], []>} : vector<4x16xf32>, vector<16x16xf32>, vector<4x16xf32> -> vector<4x16xf32>
    %cst_38 = arith.constant dense<0.000000e+00> : vector<4x16xf32>
    %77 = tpu.matmul %4, %76, %cst_38 {dimension_numbers = #tpu.dot_dimension_numbers<[1], [0], [0], [1], [0, 0, 1, 1], [], []>} : vector<4x4xf32>, vector<4x16xf32>, vector<4x16xf32> -> vector<4x16xf32>
    %78 = arith.addf %77, %8 : vector<4x16xf32>
    %cst_39 = arith.constant 0.000000e+00 : f32
    %79 = vector.broadcast %cst_39 : f32 to vector<4x16xf32>
    %80 = arith.maximumf %78, %79 : vector<4x16xf32>
    %81 = arith.maximumf %69, %80 : vector<4x16xf32>
    %c0_40 = arith.constant 0 : index
    %c6 = arith.constant 6 : index
    %c0_41 = arith.constant 0 : index
    %82 = vector.load %arg4[%c0_40, %c6, %c0_41] : memref<1x8x16xi32, #tpu.memory_space<vmem>>, vector<1x1x16xi32>
    %83 = vector.shape_cast %82 : vector<1x1x16xi32> to vector<1x16xi32>
    %84 = vector.broadcast %83 : vector<1x16xi32> to vector<16x16xi32>
    %85 = arith.cmpi eq, %5, %84 : vector<16x16xi32>
    %86 = arith.extui %85 : vector<16x16xi1> to vector<16x16xi32>
    %87 = arith.sitofp %86 : vector<16x16xi32> to vector<16x16xf32>
    %cst_42 = arith.constant dense<0.000000e+00> : vector<4x16xf32>
    %88 = tpu.matmul %1, %87, %cst_42 {dimension_numbers = #tpu.dot_dimension_numbers<[1], [0], [0], [1], [0, 0, 1, 1], [], []>} : vector<4x16xf32>, vector<16x16xf32>, vector<4x16xf32> -> vector<4x16xf32>
    %cst_43 = arith.constant dense<0.000000e+00> : vector<4x16xf32>
    %89 = tpu.matmul %4, %88, %cst_43 {dimension_numbers = #tpu.dot_dimension_numbers<[1], [0], [0], [1], [0, 0, 1, 1], [], []>} : vector<4x4xf32>, vector<4x16xf32>, vector<4x16xf32> -> vector<4x16xf32>
    %90 = arith.addf %89, %8 : vector<4x16xf32>
    %cst_44 = arith.constant 0.000000e+00 : f32
    %91 = vector.broadcast %cst_44 : f32 to vector<4x16xf32>
    %92 = arith.maximumf %90, %91 : vector<4x16xf32>
    %93 = arith.maximumf %81, %92 : vector<4x16xf32>
    %c0_45 = arith.constant 0 : index
    %c7 = arith.constant 7 : index
    %c0_46 = arith.constant 0 : index
    %94 = vector.load %arg4[%c0_45, %c7, %c0_46] : memref<1x8x16xi32, #tpu.memory_space<vmem>>, vector<1x1x16xi32>
    %95 = vector.shape_cast %94 : vector<1x1x16xi32> to vector<1x16xi32>
    %96 = vector.broadcast %95 : vector<1x16xi32> to vector<16x16xi32>
    %97 = arith.cmpi eq, %5, %96 : vector<16x16xi32>
    %98 = arith.extui %97 : vector<16x16xi1> to vector<16x16xi32>
    %99 = arith.sitofp %98 : vector<16x16xi32> to vector<16x16xf32>
    %cst_47 = arith.constant dense<0.000000e+00> : vector<4x16xf32>
    %100 = tpu.matmul %1, %99, %cst_47 {dimension_numbers = #tpu.dot_dimension_numbers<[1], [0], [0], [1], [0, 0, 1, 1], [], []>} : vector<4x16xf32>, vector<16x16xf32>, vector<4x16xf32> -> vector<4x16xf32>
    %cst_48 = arith.constant dense<0.000000e+00> : vector<4x16xf32>
    %101 = tpu.matmul %4, %100, %cst_48 {dimension_numbers = #tpu.dot_dimension_numbers<[1], [0], [0], [1], [0, 0, 1, 1], [], []>} : vector<4x4xf32>, vector<4x16xf32>, vector<4x16xf32> -> vector<4x16xf32>
    %102 = arith.addf %101, %8 : vector<4x16xf32>
    %cst_49 = arith.constant 0.000000e+00 : f32
    %103 = vector.broadcast %cst_49 : f32 to vector<4x16xf32>
    %104 = arith.maximumf %102, %103 : vector<4x16xf32>
    %105 = arith.maximumf %93, %104 : vector<4x16xf32>
    %c0_50 = arith.constant 0 : index
    %c0_51 = arith.constant 0 : index
    %106 = vector.load %arg7[%c0_50, %c0_51] : memref<8x4xf32, #tpu.memory_space<vmem>>, vector<8x4xf32>
    %cst_52 = arith.constant dense<0.000000e+00> : vector<8x16xf32>
    %107 = tpu.matmul %106, %3, %cst_52 {dimension_numbers = #tpu.dot_dimension_numbers<[1], [0], [0], [1], [0, 0, 1, 1], [], []>} : vector<8x4xf32>, vector<4x16xf32>, vector<8x16xf32> -> vector<8x16xf32>
    %c0_53 = arith.constant 0 : index
    %c0_54 = arith.constant 0 : index
    %108 = vector.load %arg8[%c0_53, %c0_54] : memref<8x4xf32, #tpu.memory_space<vmem>>, vector<8x4xf32>
    %cst_55 = arith.constant dense<0.000000e+00> : vector<8x16xf32>
    %109 = tpu.matmul %108, %105, %cst_55 {dimension_numbers = #tpu.dot_dimension_numbers<[1], [0], [0], [1], [0, 0, 1, 1], [], []>} : vector<8x4xf32>, vector<4x16xf32>, vector<8x16xf32> -> vector<8x16xf32>
    %110 = arith.addf %107, %109 : vector<8x16xf32>
    %c0_56 = arith.constant 0 : index
    %c0_57 = arith.constant 0 : index
    %111 = vector.load %arg9[%c0_56, %c0_57] : memref<8x1xf32, #tpu.memory_space<vmem>>, vector<8x1xf32>
    %112 = vector.broadcast %111 : vector<8x1xf32> to vector<8x16xf32>
    %113 = arith.addf %110, %112 : vector<8x16xf32>
    %cst_58 = arith.constant 0.000000e+00 : f32
    %114 = vector.broadcast %cst_58 : f32 to vector<8x16xf32>
    %115 = arith.maximumf %113, %114 : vector<8x16xf32>
    %c0_59 = arith.constant 0 : index
    %c0_60 = arith.constant 0 : index
    %c0_61 = arith.constant 0 : index
    %116 = vector.load %arg10[%c0_59, %c0_60, %c0_61] : memref<1x8x16xf32, #tpu.memory_space<vmem>>, vector<1x8x16xf32>
    %117 = vector.shape_cast %116 : vector<1x8x16xf32> to vector<8x16xf32>
    %118 = vector.shape_cast %115 : vector<8x16xf32> to vector<1x8x16xf32>
    tpu.vector_store %arg10[%c0_59, %c0_60, %c0_61], %118 {strides = array<i32>} : memref<1x8x16xf32, #tpu.memory_space<vmem>>, vector<1x8x16xf32>,
    return
  }
  func.func @transform_0(%arg0: i32, %arg1: i32) -> (i32, i32, i32) {
    %c0_i32 = arith.constant 0 : i32
    %c0_i32_0 = arith.constant 0 : i32
    %c0_i32_1 = arith.constant 0 : i32
    return %arg0, %c0_i32, %c0_i32_0 : i32, i32, i32
  }
  func.func @transform_1(%arg0: i32, %arg1: i32) -> (i32, i32, i32) {
    %c0_i32 = arith.constant 0 : i32
    %c0_i32_0 = arith.constant 0 : i32
    return %arg0, %c0_i32, %arg1 : i32, i32, i32
  }
  func.func @transform_2(%arg0: i32, %arg1: i32) -> (i32, i32, i32) {
    %c0_i32 = arith.constant 0 : i32
    %c0_i32_0 = arith.constant 0 : i32
    return %arg0, %c0_i32, %arg1 : i32, i32, i32
  }
  func.func @transform_3(%arg0: i32, %arg1: i32) -> (i32, i32) {
    %c0_i32 = arith.constant 0 : i32
    %c0_i32_0 = arith.constant 0 : i32
    %c0_i32_1 = arith.constant 0 : i32
    return %c0_i32, %c0_i32_0 : i32, i32
  }
  func.func @transform_4(%arg0: i32, %arg1: i32) -> (i32, i32) {
    %c0_i32 = arith.constant 0 : i32
    %c0_i32_0 = arith.constant 0 : i32
    %c0_i32_1 = arith.constant 0 : i32
    return %c0_i32, %c0_i32_0 : i32, i32
  }
  func.func @transform_5(%arg0: i32, %arg1: i32) -> (i32, i32) {
    %c0_i32 = arith.constant 0 : i32
    %c0_i32_0 = arith.constant 0 : i32
    %c0_i32_1 = arith.constant 0 : i32
    return %c0_i32, %c0_i32_0 : i32, i32
  }
  func.func @transform_6(%arg0: i32, %arg1: i32) -> (i32, i32) {
    %c0_i32 = arith.constant 0 : i32
    %c0_i32_0 = arith.constant 0 : i32
    %c0_i32_1 = arith.constant 0 : i32
    return %c0_i32, %c0_i32_0 : i32, i32
  }
  func.func @transform_7(%arg0: i32, %arg1: i32) -> (i32, i32) {
    %c0_i32 = arith.constant 0 : i32
    %c0_i32_0 = arith.constant 0 : i32
    %c0_i32_1 = arith.constant 0 : i32
    return %c0_i32, %c0_i32_0 : i32, i32
  }
  func.func @transform_8(%arg0: i32, %arg1: i32) -> (i32, i32, i32) {
    %c0_i32 = arith.constant 0 : i32
    %c0_i32_0 = arith.constant 0 : i32
    return %arg0, %c0_i32, %arg1 : i32, i32, i32
  }
}

</mosaic_0001>

<llo_original>
// kernel: tpu_custom_call.1
$region0: #{tpu_custom_call.1}
  #allocation0 [shape = 'u32[]', space=smem, size = 0x4, offset = 0x4, fixed_abs, tag = 'smem constant byte address 0x4 - core index']
  #allocation1 [shape = 'u32[72,128]{1,0:T(1,128)}', space=vmem, size = 0x9000, scoped, tag = 'internal scratch']
  %s0 = inlined_call_operand.vmem [shape: f32[2,4,16], index: 0, kind: input, shape index: {}]
  %s1 = inlined_call_operand.hbm [shape: f32[2,4,16], index: 1, kind: input, shape index: {}]
  %s2 = inlined_call_operand.vmem [shape: s32[2,8,16], index: 2, kind: input, shape index: {}]
  %s3 = inlined_call_operand.vmem [shape: f32[4,4], index: 3, kind: input, shape index: {}]
  %s4 = inlined_call_operand.vmem [shape: f32[4,1], index: 4, kind: input, shape index: {}]
  %s5 = inlined_call_operand.vmem [shape: f32[8,4], index: 5, kind: input, shape index: {}]
  %s6 = inlined_call_operand.vmem [shape: f32[8,4], index: 6, kind: input, shape index: {}]
  %s7 = inlined_call_operand.vmem [shape: f32[8,1], index: 7, kind: input, shape index: {}]
  %s8 = inlined_call_operand.hbm [shape: f32[2,8,16], index: 8, kind: output, shape index: {}]
  %s9 = sld [smem:[#allocation0]]
  $region69: #{tpu_custom_call.1} parent=0
    _
  %s11 = ssub.s32 1, %s9
  %s12 = scalar_select 0, %s11, %s9
  $region1: #{tpu_custom_call.1} parent=0
    #allocation2 [shape = 'u8[4096]{0}', space=vmem, size = 0x1000, scoped, tag = 'input window, operand 1']
    #allocation3 [shape = 's32[2]{0}', space=sflag, size = 0x8, scoped, tag = 'scoped memory for tpu_custom_call.1']
    #allocation4 [shape = 's32[2]{0}', space=sflag, size = 0x8, scoped, tag = 'scoped memory for tpu_custom_call.1']
    #allocation5 [shape = 'u8[8192]{0}', space=vmem, size = 0x2000, scoped, tag = 'output window, operand 0']
    %13 = vsyncpa [#allocation3], 0
    %s14 = scalar_lea.sflag [#allocation3], 1
    %15 = vsyncpa %s14, 0
    %16 = vsyncpa [#allocation4], 0
    %s17 = scalar_lea.sflag [#allocation4], 1
    %18 = vsyncpa %s17, 0
    loop: start=0, step=1, limit=4
    $region2: #{tpu_custom_call.1} parent=1 // loop_pre_header
      _
    $region3: #{tpu_custom_call.1} parent=1 // loop_header
      %s20 = sphi 0, %s24
      %p21 = scmp.ge.s32.totalorder %s20, 4
      %s27 = sphi 0, %s39
      %s28 = sphi 0, %s35
      %s29 = sphi 0, %s27
      %s30 = sphi 0, %s28
      %s31 = sphi 0, %s29
      %s32 = sphi 0, %s30
      %s42 = sphi 0, %s44
      %s45 = sphi 0, %s42
      %s46 = sphi 0, %s45
      %s62 = sphi 0, %s46
      %s70 = sphi 0, %s72
      %s73 = sphi 0, %s70
      %s74 = sphi 0, %s73
      %s90 = sphi 0, %s74
      %s98 = sphi 0, %s100
      %s101 = sphi 0, %s98
      %s102 = sphi 0, %s101
      %s118 = sphi 0, %s102
      %s122 = sphi 0, %s122
      %s124 = sphi 0, %s122
      %s125 = sphi 0, %s124
      %s139 = sphi 0, %s125
      %s143 = sphi 0, %s143
      %s145 = sphi 0, %s143
      %s146 = sphi 0, %s145
      %s160 = sphi 0, %s146
      %s164 = sphi 0, %s164
      %s166 = sphi 0, %s164
      %s167 = sphi 0, %s166
      %s181 = sphi 0, %s167
      %s185 = sphi 0, %s185
      %s187 = sphi 0, %s185
      %s188 = sphi 0, %s187
      %s202 = sphi 0, %s188
      %s206 = sphi 0, %s206
      %s208 = sphi 0, %s206
      %s209 = sphi 0, %s208
      %s223 = sphi 0, %s209
      %s231 = sphi 0, %s233
      %s234 = sphi 0, %s231
      %s235 = sphi 0, %s234
      %s251 = sphi 0, %s235
    $region4: #{tpu_custom_call.1} parent=1 // loop_header_branch
      %23 = sbr.rel (%p21) target = $region8
    $region5: #{tpu_custom_call.1} parent=1 // loop_body
      %s25 = ssub.s32 %s20, 1
      %s26 = ssub.s32 %s20, 2
      %s33 = sadd.s32 1, %s28
      %p34 = scmp.ge.s32.totalorder %s33, 1
      %s35 = scalar_select %p34, 0, %s33
      %s36 = sadd.s32 1, %s27
      %s37 = scalar_select %p34, %s36, %s27
      %p38 = scmp.ge.s32.totalorder %s37, 2
      %s39 = scalar_select %p38, 0, %s37
      %s40 = ssub.s32 %s27, %s39
      %p41 = scmp.eq.s32.totalorder %s40, 0
      %s43 = sadd.s32 %s42, 1
      %s44 = scalar_select %p41, %s42, %s43
      %p47 = pneg %p41
      %p48 = scmp.eq.s32.totalorder %s20, 1
      %p49 = por %p47, %p48
      %p50 = scmp.ne.s32.totalorder %s42, %s45
      %p51 = scmp.eq.s32.totalorder %s20, 0
      %p52 = por %p50, %p51
      %p53 = scmp.ne.s32.totalorder %s42, %s45
      %p54 = scmp.eq.s32.totalorder %s25, 1
      %p55 = por %p53, %p54
      %p56 = scmp.ne.s32.totalorder %s45, %s46
      %p57 = scmp.eq.s32.totalorder %s25, 0
      %p58 = por %p56, %p57
      %p59 = scmp.ne.s32.totalorder %s45, %s46
      %p60 = scmp.eq.s32.totalorder %s26, 1
      %p61 = por %p59, %p60
      %p63 = scmp.ne.s32.totalorder %s46, %s62
      %p64 = scmp.eq.s32.totalorder %s26, 0
      %p65 = por %p63, %p64
      %s66 = ssub.s32 %s27, %s39
      %s67 = ssub.s32 %s28, %s35
      %s68 = sor.u32 %s66, %s67
      %p69 = scmp.eq.s32.totalorder %s68, 0
      %s71 = sadd.s32 %s70, 1
      %s72 = scalar_select %p69, %s70, %s71
      %p75 = pneg %p69
      %p76 = scmp.eq.s32.totalorder %s20, 1
      %p77 = por %p75, %p76
      %p78 = scmp.ne.s32.totalorder %s70, %s73
      %p79 = scmp.eq.s32.totalorder %s20, 0
      %p80 = por %p78, %p79
      %p81 = scmp.ne.s32.totalorder %s70, %s73
      %p82 = scmp.eq.s32.totalorder %s25, 1
      %p83 = por %p81, %p82
      %p84 = scmp.ne.s32.totalorder %s73, %s74
      %p85 = scmp.eq.s32.totalorder %s25, 0
      %p86 = por %p84, %p85
      %p87 = scmp.ne.s32.totalorder %s73, %s74
      %p88 = scmp.eq.s32.totalorder %s26, 1
      %p89 = por %p87, %p88
      %p91 = scmp.ne.s32.totalorder %s74, %s90
      %p92 = scmp.eq.s32.totalorder %s26, 0
      %p93 = por %p91, %p92
      %s94 = ssub.s32 %s27, %s39
      %s95 = ssub.s32 %s28, %s35
      %s96 = sor.u32 %s94, %s95
      %p97 = scmp.eq.s32.totalorder %s96, 0
      %s99 = sadd.s32 %s98, 1
      %s100 = scalar_select %p97, %s98, %s99
      %p103 = pneg %p97
      %p104 = scmp.eq.s32.totalorder %s20, 1
      %p105 = por %p103, %p104
      %p106 = scmp.ne.s32.totalorder %s98, %s101
      %p107 = scmp.eq.s32.totalorder %s20, 0
      %p108 = por %p106, %p107
      %p109 = scmp.ne.s32.totalorder %s98, %s101
      %p110 = scmp.eq.s32.totalorder %s25, 1
      %p111 = por %p109, %p110
      %p112 = scmp.ne.s32.totalorder %s101, %s102
      %p113 = scmp.eq.s32.totalorder %s25, 0
      %p114 = por %p112, %p113
      %p115 = scmp.ne.s32.totalorder %s101, %s102
      %p116 = scmp.eq.s32.totalorder %s26, 1
      %p117 = por %p115, %p116
      %p119 = scmp.ne.s32.totalorder %s102, %s118
      %p120 = scmp.eq.s32.totalorder %s26, 0
      %p121 = por %p119, %p120
      %s123 = sadd.s32 %s122, 1
      %p126 = scmp.eq.s32.totalorder %s20, 1
      %p127 = scmp.ne.s32.totalorder %s122, %s124
      %p128 = scmp.eq.s32.totalorder %s20, 0
      %p129 = por %p127, %p128
      %p130 = scmp.ne.s32.totalorder %s122, %s124
      %p131 = scmp.eq.s32.totalorder %s25, 1
      %p132 = por %p130, %p131
      %p133 = scmp.ne.s32.totalorder %s124, %s125
      %p134 = scmp.eq.s32.totalorder %s25, 0
      %p135 = por %p133, %p134
      %p136 = scmp.ne.s32.totalorder %s124, %s125
      %p137 = scmp.eq.s32.totalorder %s26, 1
      %p138 = por %p136, %p137
      %p140 = scmp.ne.s32.totalorder %s125, %s139
      %p141 = scmp.eq.s32.totalorder %s26, 0
      %p142 = por %p140, %p141
      %s144 = sadd.s32 %s143, 1
      %p147 = scmp.eq.s32.totalorder %s20, 1
      %p148 = scmp.ne.s32.totalorder %s143, %s145
      %p149 = scmp.eq.s32.totalorder %s20, 0
      %p150 = por %p148, %p149
      %p151 = scmp.ne.s32.totalorder %s143, %s145
      %p152 = scmp.eq.s32.totalorder %s25, 1
      %p153 = por %p151, %p152
      %p154 = scmp.ne.s32.totalorder %s145, %s146
      %p155 = scmp.eq.s32.totalorder %s25, 0
      %p156 = por %p154, %p155
      %p157 = scmp.ne.s32.totalorder %s145, %s146
      %p158 = scmp.eq.s32.totalorder %s26, 1
      %p159 = por %p157, %p158
      %p161 = scmp.ne.s32.totalorder %s146, %s160
      %p162 = scmp.eq.s32.totalorder %s26, 0
      %p163 = por %p161, %p162
      %s165 = sadd.s32 %s164, 1
      %p168 = scmp.eq.s32.totalorder %s20, 1
      %p169 = scmp.ne.s32.totalorder %s164, %s166
      %p170 = scmp.eq.s32.totalorder %s20, 0
      %p171 = por %p169, %p170
      %p172 = scmp.ne.s32.totalorder %s164, %s166
      %p173 = scmp.eq.s32.totalorder %s25, 1
      %p174 = por %p172, %p173
      %p175 = scmp.ne.s32.totalorder %s166, %s167
      %p176 = scmp.eq.s32.totalorder %s25, 0
      %p177 = por %p175, %p176
      %p178 = scmp.ne.s32.totalorder %s166, %s167
      %p179 = scmp.eq.s32.totalorder %s26, 1
      %p180 = por %p178, %p179
      %p182 = scmp.ne.s32.totalorder %s167, %s181
      %p183 = scmp.eq.s32.totalorder %s26, 0
      %p184 = por %p182, %p183
      %s186 = sadd.s32 %s185, 1
      %p189 = scmp.eq.s32.totalorder %s20, 1
      %p190 = scmp.ne.s32.totalorder %s185, %s187
      %p191 = scmp.eq.s32.totalorder %s20, 0
      %p192 = por %p190, %p191
      %p193 = scmp.ne.s32.totalorder %s185, %s187
      %p194 = scmp.eq.s32.totalorder %s25, 1
      %p195 = por %p193, %p194
      %p196 = scmp.ne.s32.totalorder %s187, %s188
      %p197 = scmp.eq.s32.totalorder %s25, 0
      %p198 = por %p196, %p197
      %p199 = scmp.ne.s32.totalorder %s187, %s188
      %p200 = scmp.eq.s32.totalorder %s26, 1
      %p201 = por %p199, %p200
      %p203 = scmp.ne.s32.totalorder %s188, %s202
      %p204 = scmp.eq.s32.totalorder %s26, 0
      %p205 = por %p203, %p204
      %s207 = sadd.s32 %s206, 1
      %p210 = scmp.eq.s32.totalorder %s20, 1
      %p211 = scmp.ne.s32.totalorder %s206, %s208
      %p212 = scmp.eq.s32.totalorder %s20, 0
      %p213 = por %p211, %p212
      %p214 = scmp.ne.s32.totalorder %s206, %s208
      %p215 = scmp.eq.s32.totalorder %s25, 1
      %p216 = por %p214, %p215
      %p217 = scmp.ne.s32.totalorder %s208, %s209
      %p218 = scmp.eq.s32.totalorder %s25, 0
      %p219 = por %p217, %p218
      %p220 = scmp.ne.s32.totalorder %s208, %s209
      %p221 = scmp.eq.s32.totalorder %s26, 1
      %p222 = por %p220, %p221
      %p224 = scmp.ne.s32.totalorder %s209, %s223
      %p225 = scmp.eq.s32.totalorder %s26, 0
      %p226 = por %p224, %p225
      %s227 = ssub.s32 %s27, %s39
      %s228 = ssub.s32 %s28, %s35
      %s229 = sor.u32 %s227, %s228
      %p230 = scmp.eq.s32.totalorder %s229, 0
      %s232 = sadd.s32 %s231, 1
      %s233 = scalar_select %p230, %s231, %s232
      %p236 = pneg %p230
      %p237 = scmp.eq.s32.totalorder %s20, 1
      %p238 = por %p236, %p237
      %p239 = scmp.ne.s32.totalorder %s231, %s234
      %p240 = scmp.eq.s32.totalorder %s20, 0
      %p241 = por %p239, %p240
      %p242 = scmp.ne.s32.totalorder %s231, %s234
      %p243 = scmp.eq.s32.totalorder %s25, 1
      %p244 = por %p242, %p243
      %p245 = scmp.ne.s32.totalorder %s234, %s235
      %p246 = scmp.eq.s32.totalorder %s25, 0
      %p247 = por %p245, %p246
      %p248 = scmp.ne.s32.totalorder %s234, %s235
      %p249 = scmp.eq.s32.totalorder %s26, 1
      %p250 = por %p248, %p249
      %p252 = scmp.ne.s32.totalorder %s235, %s251
      %p253 = scmp.eq.s32.totalorder %s26, 0
      %p254 = por %p252, %p253
      %p255 = scmp.le.s32.totalorder 1, %s20
      %p256 = scmp.lt.s32.totalorder %s20, 3
      %p257 = pnand %p255, %p256
      %p258 = pneg %p257
      // Predicated region
      $region9: #{tpu_custom_call.1} parent=5 // pred_check
        _
      $region10: #{tpu_custom_call.1} parent=5 // pred_check_branch
        %260 = sbr.rel (%p257) target = $region12
      $region11: #{tpu_custom_call.1} parent=5 // pred_region
        %s261 = ssub.s32 %s20, 1
        // Predicated region
        $region13: #{tpu_custom_call.1} parent=11 // pred_check
          %p262 = pneg %p135
        $region14: #{tpu_custom_call.1} parent=11 // pred_check_branch
          %264 = sbr.rel (%p262) target = $region16
        $region15: #{tpu_custom_call.1} parent=11 // pred_region
          _
        $region16: #{tpu_custom_call.1} parent=11 // pred_fallthru
          _
        // Predicated region
        $region17: #{tpu_custom_call.1} parent=11 // pred_check
          %p265 = pneg %p156
        $region18: #{tpu_custom_call.1} parent=11 // pred_check_branch
          %267 = sbr.rel (%p265) target = $region20
        $region19: #{tpu_custom_call.1} parent=11 // pred_region
          _
        $region20: #{tpu_custom_call.1} parent=11 // pred_fallthru
          _
        // Predicated region
        $region21: #{tpu_custom_call.1} parent=11 // pred_check
          %p268 = pneg %p177
        $region22: #{tpu_custom_call.1} parent=11 // pred_check_branch
          %270 = sbr.rel (%p268) target = $region24
        $region23: #{tpu_custom_call.1} parent=11 // pred_region
          _
        $region24: #{tpu_custom_call.1} parent=11 // pred_fallthru
          _
        // Predicated region
        $region25: #{tpu_custom_call.1} parent=11 // pred_check
          %p271 = pneg %p198
        $region26: #{tpu_custom_call.1} parent=11 // pred_check_branch
          %273 = sbr.rel (%p271) target = $region28
        $region27: #{tpu_custom_call.1} parent=11 // pred_region
          _
        $region28: #{tpu_custom_call.1} parent=11 // pred_fallthru
          _
        // Predicated region
        $region29: #{tpu_custom_call.1} parent=11 // pred_check
          %p274 = pneg %p219
        $region30: #{tpu_custom_call.1} parent=11 // pred_check_branch
          %276 = sbr.rel (%p274) target = $region32
        $region31: #{tpu_custom_call.1} parent=11 // pred_region
          _
        $region32: #{tpu_custom_call.1} parent=11 // pred_fallthru
          _
      $region12: #{tpu_custom_call.1} parent=5 // pred_fallthru
        _
      %p277 = scmp.lt.s32.totalorder %s20, 2
      // Predicated region
      $region33: #{tpu_custom_call.1} parent=5 // pred_check
        %p278 = pneg %p277
      $region34: #{tpu_custom_call.1} parent=5 // pred_check_branch
        %280 = sbr.rel (%p278) target = $region36
      $region35: #{tpu_custom_call.1} parent=5 // pred_region
        // Predicated region
        $region37: #{tpu_custom_call.1} parent=35 // pred_check
          %p281 = pneg %p52
        $region38: #{tpu_custom_call.1} parent=35 // pred_check_branch
          %283 = sbr.rel (%p281) target = $region40
        $region39: #{tpu_custom_call.1} parent=35 // pred_region
          %p284 = scmp.lt.s32.totalorder %s27, 1
          %s285 = scalar_select %p284, %s27, 1
          %s286 = smul.addr %s285, 4
          %s287 = scalar_lea.vmem %s0, %s286
        $region40: #{tpu_custom_call.1} parent=35 // pred_fallthru
          _
        // Predicated region
        $region41: #{tpu_custom_call.1} parent=35 // pred_check
          %p288 = pneg %p80
        $region42: #{tpu_custom_call.1} parent=35 // pred_check_branch
          %290 = sbr.rel (%p288) target = $region44
        $region43: #{tpu_custom_call.1} parent=35 // pred_region
          %s291 = sand.u32 %s70, 1
          %s292 = scalar_lea.sflag [#allocation3], %s291
          %s293 = sand.u32 %s70, 1
          %s294 = smul.addr %s293, 4
          %s295 = scalar_lea.vmem [#allocation2], %s294
          %297 = vsyncadd %s292, 0
          %s298 = sadd.s32 %s28, %s27
          %s299 = smul.addr %s298, 4
          %s300 = scalar_lea.hbm %s1, %s299
          %s302 = sshll.u32 %s300, 4
          %s303 = int_to_ptr.hbm [resolvable:$true] %s302
          %s304 = sshll.u32 %s295, 4
          %s305 = int_to_ptr.vmem [resolvable:$true] %s304
          %307 = dma.hbm_to_vmem [thread:$0]  %s303, 64, %s305, %s292
        $region44: #{tpu_custom_call.1} parent=35 // pred_fallthru
          _
        // Predicated region
        $region45: #{tpu_custom_call.1} parent=35 // pred_check
          %p308 = pneg %p108
        $region46: #{tpu_custom_call.1} parent=35 // pred_check_branch
          %310 = sbr.rel (%p308) target = $region48
        $region47: #{tpu_custom_call.1} parent=35 // pred_region
          %p311 = scmp.lt.s32.totalorder %s27, 1
          %s312 = scalar_select %p311, %s27, 1
          %p313 = scmp.lt.s32.totalorder %s28, 0
          %s314 = scalar_select %p313, %s28, 0
          %s315 = sadd.s32 %s314, %s312
          %s316 = smul.addr %s315, 8
          %s317 = scalar_lea.vmem %s2, %s316
        $region48: #{tpu_custom_call.1} parent=35 // pred_fallthru
          _
      $region36: #{tpu_custom_call.1} parent=5 // pred_fallthru
        _
      %p318 = scmp.le.s32.totalorder 1, %s20
      %p319 = scmp.lt.s32.totalorder %s20, 3
      %p320 = pnand %p318, %p319
      %p321 = pneg %p320
      // Predicated region
      $region49: #{tpu_custom_call.1} parent=5 // pred_check
        _
      $region50: #{tpu_custom_call.1} parent=5 // pred_check_branch
        %323 = sbr.rel (%p320) target = $region52
      $region51: #{tpu_custom_call.1} parent=5 // pred_region
        %s324 = ssub.s32 %s20, 1
        %s325 = sand.u32 %s73, 1
        %s326 = scalar_lea.sflag [#allocation3], %s325
        %s327 = sand.u32 %s73, 1
        %s328 = smul.addr %s327, 4
        %s329 = scalar_lea.vmem [#allocation2], %s328
        // Predicated region
        $region53: #{tpu_custom_call.1} parent=51 // pred_check
          %p330 = pneg %p86
        $region54: #{tpu_custom_call.1} parent=51 // pred_check_branch
          %332 = sbr.rel (%p330) target = $region56
        $region55: #{tpu_custom_call.1} parent=51 // pred_region
          %334 = dma.done %s326, 64
        $region56: #{tpu_custom_call.1} parent=51 // pred_fallthru
          _
        %p335 = scmp.lt.s32.totalorder %s29, 1
        %s336 = scalar_select %p335, %s29, 1
        %s337 = smul.addr %s336, 4
        %s338 = scalar_lea.vmem %s0, %s337
        %p339 = pneg %p58
        %p340 = pneg %p55
        %s341 = sand.u32 %s73, 1
        %s342 = scalar_lea.sflag [#allocation3], %s341
        %s343 = sand.u32 %s73, 1
        %s344 = smul.addr %s343, 4
        %s345 = scalar_lea.vmem [#allocation2], %s344
        %p346 = pneg %p86
        %p347 = pneg %p83
        %p348 = scmp.lt.s32.totalorder %s29, 1
        %s349 = scalar_select %p348, %s29, 1
        %p350 = scmp.lt.s32.totalorder %s30, 0
        %s351 = scalar_select %p350, %s30, 0
        %s352 = sadd.s32 %s351, %s349
        %s353 = smul.addr %s352, 8
        %s354 = scalar_lea.vmem %s2, %s353
        %p355 = pneg %p114
        %p356 = pneg %p111
        %p357 = pneg %p135
        %p358 = pneg %p132
        %p359 = pneg %p156
        %p360 = pneg %p153
        %p361 = pneg %p177
        %p362 = pneg %p174
        %p363 = pneg %p198
        %p364 = pneg %p195
        %p365 = pneg %p219
        %p366 = pneg %p216
        %p367 = pneg %p247
        %p368 = pneg %p244
        %s369 = sand.u32 %s234, 1
        %s370 = scalar_lea.sflag [#allocation4], %s369
        %s371 = sand.u32 %s234, 1
        %s372 = smul.addr %s371, 8
        %s373 = scalar_lea.vmem [#allocation5], %s372
        %p374 = scmp.lt.s32.totalorder %s29, 1
        %s375 = scalar_select %p374, %s29, 1
        %s376 = smul.addr %s375, 4
        %s377 = scalar_lea.vmem %s0, %s376
        %p378 = scmp.lt.s32.totalorder %s29, 1
        %s379 = scalar_select %p378, %s29, 1
        %p380 = scmp.lt.s32.totalorder %s30, 0
        %s381 = scalar_select %p380, %s30, 0
        %s382 = sadd.s32 %s381, %s379
        %s383 = smul.addr %s382, 8
        %s384 = scalar_lea.vmem %s2, %s383
        %v385 = vld [vmem:[%s377] sm:$0xf]
        %v386 = vld [vmem:[%s329] sm:$0xf]
        %v387 = vld [vmem:[%s3] sm:$0xf]
        %v388 = vlaneseq
        %v389 = vshrl.u32 %v388, 7
        %v390 = vadd.s32 %v389, 8
        %v391 = vld [vmem:[%s4] sm:$0xf]
        %393 = vset.pattern.permute.xlu0 0
        %394 = vperm.xlu0 %393, %v391
        %v395 = vpop.permute.xlu0 %394
        %v397 = vld [vmem:[%s384] sm:$0x1]
        %v398 = vperm.slane %v397, 0
        %vm399 = vcmp.eq.s32.totalorder %v389, %v398
        %vm400 = vcmp.eq.s32.totalorder %v390, %v398
        %v401 = vsel %vm399, 1, 0
        %v402 = vsel %vm400, 1, 0
        %v403 = vcvt.s32.f32 %v401
        %v404 = vcvt.s32.f32 %v402
        %vm405 = vcmask 130048
        %v407 = vsel %vm405, %v385, 0
        %409 = vmatpush.msra.mxu0 0.0
        %410 = vmatpush.msra.mxu0 0.0
        %411 = vmatpush.msra.mxu0 0.0
        %412 = vmatpush.msra.mxu0 0.0
        %413 = vmatpush.msra.mxu0 0.0
        %414 = vmatpush.msra.mxu0 0.0
        %415 = vmatpush.msra.mxu0 0.0
        %416 = vmatpush.msra.mxu0 0.0
        %417 = vmatpush.msra.mxu0 0.0
        %418 = vmatpush.msra.mxu0 0.0
        %419 = vmatpush.msra.mxu0 0.0
        %420 = vmatpush.msra.mxu0 0.0
        %421 = vmatpush.msra.mxu0 0.0
        %422 = vmatpush.msra.mxu0 0.0
        %423 = vmatpush.msra.mxu0 %v404
        %424 = vmatpush.msra.mxu0 %v403
        %425 = vmatmul.f32.gmra.mxu0 %v407
        %v426 = vpop.f32.mrf.mxu0
        %v427 = vadd.f32 0.0, %v426
        %428 = vdwg.mxu0
        %vm429 = vcmask 31744
        %v431 = vsel %vm429, %v387, 0
        %vm433 = vcmask 1043456
        %v435 = vsel %vm433, %v427, 0
        %437 = vmatpush.msra.mxu0 0.0
        %438 = vmatpush.msra.mxu0 0.0
        %439 = vmatpush.msra.mxu0 0.0
        %440 = vmatpush.msra.mxu0 0.0
        %441 = vmatpush.msra.mxu0 0.0
        %442 = vmatpush.msra.mxu0 0.0
        %443 = vmatpush.msra.mxu0 0.0
        %444 = vmatpush.msra.mxu0 0.0
        %445 = vmatpush.msra.mxu0 0.0
        %446 = vmatpush.msra.mxu0 0.0
        %447 = vmatpush.msra.mxu0 0.0
        %448 = vmatpush.msra.mxu0 0.0
        %449 = vmatpush.msra.mxu0 0.0
        %450 = vmatpush.msra.mxu0 0.0
        %451 = vmatpush.msra.mxu0 0.0
        %452 = vmatpush.msra.mxu0 %v435
        %453 = vmatmul.f32.gmra.mxu0 %v431
        %v454 = vpop.f32.mrf.mxu0
        %v455 = vadd.f32 %v395, %v454
        %456 = vdwg.mxu0
        %v457 = vmax.f32 %v455, 0.0
        %v458 = vld [vmem:[%s384 + $0x1] sm:$0x1]
        %v459 = vperm.slane %v458, 0
        %vm460 = vcmp.eq.s32.totalorder %v389, %v459
        %vm461 = vcmp.eq.s32.totalorder %v390, %v459
        %v462 = vsel %vm460, 1, 0
        %v463 = vsel %vm461, 1, 0
        %v464 = vcvt.s32.f32 %v462
        %v465 = vcvt.s32.f32 %v463
        %466 = vmatpush.msra.mxu0 0.0
        %467 = vmatpush.msra.mxu0 0.0
        %468 = vmatpush.msra.mxu0 0.0
        %469 = vmatpush.msra.mxu0 0.0
        %470 = vmatpush.msra.mxu0 0.0
        %471 = vmatpush.msra.mxu0 0.0
        %472 = vmatpush.msra.mxu0 0.0
        %473 = vmatpush.msra.mxu0 0.0
        %474 = vmatpush.msra.mxu0 0.0
        %475 = vmatpush.msra.mxu0 0.0
        %476 = vmatpush.msra.mxu0 0.0
        %477 = vmatpush.msra.mxu0 0.0
        %478 = vmatpush.msra.mxu0 0.0
        %479 = vmatpush.msra.mxu0 0.0
        %480 = vmatpush.msra.mxu0 %v465
        %481 = vmatpush.msra.mxu0 %v464
        %482 = vmatmul.f32.gmra.mxu0 %v407
        %v483 = vpop.f32.mrf.mxu0
        %v484 = vadd.f32 0.0, %v483
        %485 = vdwg.mxu0
        %v487 = vsel %vm433, %v484, 0
        %489 = vmatpush.msra.mxu0 0.0
        %490 = vmatpush.msra.mxu0 0.0
        %491 = vmatpush.msra.mxu0 0.0
        %492 = vmatpush.msra.mxu0 0.0
        %493 = vmatpush.msra.mxu0 0.0
        %494 = vmatpush.msra.mxu0 0.0
        %495 = vmatpush.msra.mxu0 0.0
        %496 = vmatpush.msra.mxu0 0.0
        %497 = vmatpush.msra.mxu0 0.0
        %498 = vmatpush.msra.mxu0 0.0
        %499 = vmatpush.msra.mxu0 0.0
        %500 = vmatpush.msra.mxu0 0.0
        %501 = vmatpush.msra.mxu0 0.0
        %502 = vmatpush.msra.mxu0 0.0
        %503 = vmatpush.msra.mxu0 0.0
        %504 = vmatpush.msra.mxu0 %v487
        %505 = vmatmul.f32.gmra.mxu0 %v431
        %v506 = vpop.f32.mrf.mxu0
        %v507 = vadd.f32 %v395, %v506
        %508 = vdwg.mxu0
        %v509 = vmax.f32 %v507, 0.0
        %v510 = vmax.f32 %v457, %v509
        %v511 = vld [vmem:[%s384 + $0x2] sm:$0x1]
        %v512 = vperm.slane %v511, 0
        %vm513 = vcmp.eq.s32.totalorder %v389, %v512
        %vm514 = vcmp.eq.s32.totalorder %v390, %v512
        %v515 = vsel %vm513, 1, 0
        %v516 = vsel %vm514, 1, 0
        %v517 = vcvt.s32.f32 %v515
        %v518 = vcvt.s32.f32 %v516
        %519 = vmatpush.msra.mxu0 0.0
        %520 = vmatpush.msra.mxu0 0.0
        %521 = vmatpush.msra.mxu0 0.0
        %522 = vmatpush.msra.mxu0 0.0
        %523 = vmatpush.msra.mxu0 0.0
        %524 = vmatpush.msra.mxu0 0.0
        %525 = vmatpush.msra.mxu0 0.0
        %526 = vmatpush.msra.mxu0 0.0
        %527 = vmatpush.msra.mxu0 0.0
        %528 = vmatpush.msra.mxu0 0.0
        %529 = vmatpush.msra.mxu0 0.0
        %530 = vmatpush.msra.mxu0 0.0
        %531 = vmatpush.msra.mxu0 0.0
        %532 = vmatpush.msra.mxu0 0.0
        %533 = vmatpush.msra.mxu0 %v518
        %534 = vmatpush.msra.mxu0 %v517
        %535 = vmatmul.f32.gmra.mxu0 %v407
        %v536 = vpop.f32.mrf.mxu0
        %v537 = vadd.f32 0.0, %v536
        %538 = vdwg.mxu0
        %v540 = vsel %vm433, %v537, 0
        %542 = vmatpush.msra.mxu0 0.0
        %543 = vmatpush.msra.mxu0 0.0
        %544 = vmatpush.msra.mxu0 0.0
        %545 = vmatpush.msra.mxu0 0.0
        %546 = vmatpush.msra.mxu0 0.0
        %547 = vmatpush.msra.mxu0 0.0
        %548 = vmatpush.msra.mxu0 0.0
        %549 = vmatpush.msra.mxu0 0.0
        %550 = vmatpush.msra.mxu0 0.0
        %551 = vmatpush.msra.mxu0 0.0
        %552 = vmatpush.msra.mxu0 0.0
        %553 = vmatpush.msra.mxu0 0.0
        %554 = vmatpush.msra.mxu0 0.0
        %555 = vmatpush.msra.mxu0 0.0
        %556 = vmatpush.msra.mxu0 0.0
        %557 = vmatpush.msra.mxu0 %v540
        %558 = vmatmul.f32.gmra.mxu0 %v431
        %v559 = vpop.f32.mrf.mxu0
        %v560 = vadd.f32 %v395, %v559
        %561 = vdwg.mxu0
        %v562 = vmax.f32 %v560, 0.0
        %v563 = vmax.f32 %v510, %v562
        %v564 = vld [vmem:[%s384 + $0x3] sm:$0x1]
        %v565 = vperm.slane %v564, 0
        %vm566 = vcmp.eq.s32.totalorder %v389, %v565
        %vm567 = vcmp.eq.s32.totalorder %v390, %v565
        %v568 = vsel %vm566, 1, 0
        %v569 = vsel %vm567, 1, 0
        %v570 = vcvt.s32.f32 %v568
        %v571 = vcvt.s32.f32 %v569
        %572 = vmatpush.msra.mxu0 0.0
        %573 = vmatpush.msra.mxu0 0.0
        %574 = vmatpush.msra.mxu0 0.0
        %575 = vmatpush.msra.mxu0 0.0
        %576 = vmatpush.msra.mxu0 0.0
        %577 = vmatpush.msra.mxu0 0.0
        %578 = vmatpush.msra.mxu0 0.0
        %579 = vmatpush.msra.mxu0 0.0
        %580 = vmatpush.msra.mxu0 0.0
        %581 = vmatpush.msra.mxu0 0.0
        %582 = vmatpush.msra.mxu0 0.0
        %583 = vmatpush.msra.mxu0 0.0
        %584 = vmatpush.msra.mxu0 0.0
        %585 = vmatpush.msra.mxu0 0.0
        %586 = vmatpush.msra.mxu0 %v571
        %587 = vmatpush.msra.mxu0 %v570
        %588 = vmatmul.f32.gmra.mxu0 %v407
        %v589 = vpop.f32.mrf.mxu0
        %v590 = vadd.f32 0.0, %v589
        %591 = vdwg.mxu0
        %v593 = vsel %vm433, %v590, 0
        %595 = vmatpush.msra.mxu0 0.0
        %596 = vmatpush.msra.mxu0 0.0
        %597 = vmatpush.msra.mxu0 0.0
        %598 = vmatpush.msra.mxu0 0.0
        %599 = vmatpush.msra.mxu0 0.0
        %600 = vmatpush.msra.mxu0 0.0
        %601 = vmatpush.msra.mxu0 0.0
        %602 = vmatpush.msra.mxu0 0.0
        %603 = vmatpush.msra.mxu0 0.0
        %604 = vmatpush.msra.mxu0 0.0
        %605 = vmatpush.msra.mxu0 0.0
        %606 = vmatpush.msra.mxu0 0.0
        %607 = vmatpush.msra.mxu0 0.0
        %608 = vmatpush.msra.mxu0 0.0
        %609 = vmatpush.msra.mxu0 0.0
        %610 = vmatpush.msra.mxu0 %v593
        %611 = vmatmul.f32.gmra.mxu0 %v431
        %v612 = vpop.f32.mrf.mxu0
        %v613 = vadd.f32 %v395, %v612
        %614 = vdwg.mxu0
        %v615 = vmax.f32 %v613, 0.0
        %v616 = vmax.f32 %v563, %v615
        %v617 = vld [vmem:[%s384 + $0x4] sm:$0x1]
        %v618 = vperm.slane %v617, 0
        %vm619 = vcmp.eq.s32.totalorder %v389, %v618
        %vm620 = vcmp.eq.s32.totalorder %v390, %v618
        %v621 = vsel %vm619, 1, 0
        %v622 = vsel %vm620, 1, 0
        %v623 = vcvt.s32.f32 %v621
        %v624 = vcvt.s32.f32 %v622
        %625 = vmatpush.msra.mxu0 0.0
        %626 = vmatpush.msra.mxu0 0.0
        %627 = vmatpush.msra.mxu0 0.0
        %628 = vmatpush.msra.mxu0 0.0
        %629 = vmatpush.msra.mxu0 0.0
        %630 = vmatpush.msra.mxu0 0.0
        %631 = vmatpush.msra.mxu0 0.0
        %632 = vmatpush.msra.mxu0 0.0
        %633 = vmatpush.msra.mxu0 0.0
        %634 = vmatpush.msra.mxu0 0.0
        %635 = vmatpush.msra.mxu0 0.0
        %636 = vmatpush.msra.mxu0 0.0
        %637 = vmatpush.msra.mxu0 0.0
        %638 = vmatpush.msra.mxu0 0.0
        %639 = vmatpush.msra.mxu0 %v624
        %640 = vmatpush.msra.mxu0 %v623
        %641 = vmatmul.f32.gmra.mxu0 %v407
        %v642 = vpop.f32.mrf.mxu0
        %v643 = vadd.f32 0.0, %v642
        %644 = vdwg.mxu0
        %v646 = vsel %vm433, %v643, 0
        %648 = vmatpush.msra.mxu0 0.0
        %649 = vmatpush.msra.mxu0 0.0
        %650 = vmatpush.msra.mxu0 0.0
        %651 = vmatpush.msra.mxu0 0.0
        %652 = vmatpush.msra.mxu0 0.0
        %653 = vmatpush.msra.mxu0 0.0
        %654 = vmatpush.msra.mxu0 0.0
        %655 = vmatpush.msra.mxu0 0.0
        %656 = vmatpush.msra.mxu0 0.0
        %657 = vmatpush.msra.mxu0 0.0
        %658 = vmatpush.msra.mxu0 0.0
        %659 = vmatpush.msra.mxu0 0.0
        %660 = vmatpush.msra.mxu0 0.0
        %661 = vmatpush.msra.mxu0 0.0
        %662 = vmatpush.msra.mxu0 0.0
        %663 = vmatpush.msra.mxu0 %v646
        %664 = vmatmul.f32.gmra.mxu0 %v431
        %v665 = vpop.f32.mrf.mxu0
        %v666 = vadd.f32 %v395, %v665
        %667 = vdwg.mxu0
        %v668 = vmax.f32 %v666, 0.0
        %v669 = vmax.f32 %v616, %v668
        %v670 = vld [vmem:[%s384 + $0x5] sm:$0x1]
        %v671 = vperm.slane %v670, 0
        %vm672 = vcmp.eq.s32.totalorder %v389, %v671
        %vm673 = vcmp.eq.s32.totalorder %v390, %v671
        %v674 = vsel %vm672, 1, 0
        %v675 = vsel %vm673, 1, 0
        %v676 = vcvt.s32.f32 %v674
        %v677 = vcvt.s32.f32 %v675
        %678 = vmatpush.msra.mxu0 0.0
        %679 = vmatpush.msra.mxu0 0.0
        %680 = vmatpush.msra.mxu0 0.0
        %681 = vmatpush.msra.mxu0 0.0
        %682 = vmatpush.msra.mxu0 0.0
        %683 = vmatpush.msra.mxu0 0.0
        %684 = vmatpush.msra.mxu0 0.0
        %685 = vmatpush.msra.mxu0 0.0
        %686 = vmatpush.msra.mxu0 0.0
        %687 = vmatpush.msra.mxu0 0.0
        %688 = vmatpush.msra.mxu0 0.0
        %689 = vmatpush.msra.mxu0 0.0
        %690 = vmatpush.msra.mxu0 0.0
        %691 = vmatpush.msra.mxu0 0.0
        %692 = vmatpush.msra.mxu0 %v677
        %693 = vmatpush.msra.mxu0 %v676
        %694 = vmatmul.f32.gmra.mxu0 %v407
        %v695 = vpop.f32.mrf.mxu0
        %v696 = vadd.f32 0.0, %v695
        %697 = vdwg.mxu0
        %v699 = vsel %vm433, %v696, 0
        %701 = vmatpush.msra.mxu0 0.0
        %702 = vmatpush.msra.mxu0 0.0
        %703 = vmatpush.msra.mxu0 0.0
        %704 = vmatpush.msra.mxu0 0.0
        %705 = vmatpush.msra.mxu0 0.0
        %706 = vmatpush.msra.mxu0 0.0
        %707 = vmatpush.msra.mxu0 0.0
        %708 = vmatpush.msra.mxu0 0.0
        %709 = vmatpush.msra.mxu0 0.0
        %710 = vmatpush.msra.mxu0 0.0
        %711 = vmatpush.msra.mxu0 0.0
        %712 = vmatpush.msra.mxu0 0.0
        %713 = vmatpush.msra.mxu0 0.0
        %714 = vmatpush.msra.mxu0 0.0
        %715 = vmatpush.msra.mxu0 0.0
        %716 = vmatpush.msra.mxu0 %v699
        %717 = vmatmul.f32.gmra.mxu0 %v431
        %v718 = vpop.f32.mrf.mxu0
        %v719 = vadd.f32 %v395, %v718
        %720 = vdwg.mxu0
        %v721 = vmax.f32 %v719, 0.0
        %v722 = vmax.f32 %v669, %v721
        %v723 = vld [vmem:[%s384 + $0x6] sm:$0x1]
        %v724 = vperm.slane %v723, 0
        %vm725 = vcmp.eq.s32.totalorder %v389, %v724
        %vm726 = vcmp.eq.s32.totalorder %v390, %v724
        %v727 = vsel %vm725, 1, 0
        %v728 = vsel %vm726, 1, 0
        %v729 = vcvt.s32.f32 %v727
        %v730 = vcvt.s32.f32 %v728
        %731 = vmatpush.msra.mxu0 0.0
        %732 = vmatpush.msra.mxu0 0.0
        %733 = vmatpush.msra.mxu0 0.0
        %734 = vmatpush.msra.mxu0 0.0
        %735 = vmatpush.msra.mxu0 0.0
        %736 = vmatpush.msra.mxu0 0.0
        %737 = vmatpush.msra.mxu0 0.0
        %738 = vmatpush.msra.mxu0 0.0
        %739 = vmatpush.msra.mxu0 0.0
        %740 = vmatpush.msra.mxu0 0.0
        %741 = vmatpush.msra.mxu0 0.0
        %742 = vmatpush.msra.mxu0 0.0
        %743 = vmatpush.msra.mxu0 0.0
        %744 = vmatpush.msra.mxu0 0.0
        %745 = vmatpush.msra.mxu0 %v730
        %746 = vmatpush.msra.mxu0 %v729
        %747 = vmatmul.f32.gmra.mxu0 %v407
        %v748 = vpop.f32.mrf.mxu0
        %v749 = vadd.f32 0.0, %v748
        %750 = vdwg.mxu0
        %v752 = vsel %vm433, %v749, 0
        %754 = vmatpush.msra.mxu0 0.0
        %755 = vmatpush.msra.mxu0 0.0
        %756 = vmatpush.msra.mxu0 0.0
        %757 = vmatpush.msra.mxu0 0.0
        %758 = vmatpush.msra.mxu0 0.0
        %759 = vmatpush.msra.mxu0 0.0
        %760 = vmatpush.msra.mxu0 0.0
        %761 = vmatpush.msra.mxu0 0.0
        %762 = vmatpush.msra.mxu0 0.0
        %763 = vmatpush.msra.mxu0 0.0
        %764 = vmatpush.msra.mxu0 0.0
        %765 = vmatpush.msra.mxu0 0.0
        %766 = vmatpush.msra.mxu0 0.0
        %767 = vmatpush.msra.mxu0 0.0
        %768 = vmatpush.msra.mxu0 0.0
        %769 = vmatpush.msra.mxu0 %v752
        %770 = vmatmul.f32.gmra.mxu0 %v431
        %v771 = vpop.f32.mrf.mxu0
        %v772 = vadd.f32 %v395, %v771
        %773 = vdwg.mxu0
        %v774 = vmax.f32 %v772, 0.0
        %v775 = vmax.f32 %v722, %v774
        %v776 = vld [vmem:[%s384 + $0x7] sm:$0x1]
        %v777 = vperm.slane %v776, 0
        %vm778 = vcmp.eq.s32.totalorder %v389, %v777
        %vm779 = vcmp.eq.s32.totalorder %v390, %v777
        %v780 = vsel %vm778, 1, 0
        %v781 = vsel %vm779, 1, 0
        %v782 = vcvt.s32.f32 %v780
        %v783 = vcvt.s32.f32 %v781
        %784 = vmatpush.msra.mxu0 0.0
        %785 = vmatpush.msra.mxu0 0.0
        %786 = vmatpush.msra.mxu0 0.0
        %787 = vmatpush.msra.mxu0 0.0
        %788 = vmatpush.msra.mxu0 0.0
        %789 = vmatpush.msra.mxu0 0.0
        %790 = vmatpush.msra.mxu0 0.0
        %791 = vmatpush.msra.mxu0 0.0
        %792 = vmatpush.msra.mxu0 0.0
        %793 = vmatpush.msra.mxu0 0.0
        %794 = vmatpush.msra.mxu0 0.0
        %795 = vmatpush.msra.mxu0 0.0
        %796 = vmatpush.msra.mxu0 0.0
        %797 = vmatpush.msra.mxu0 0.0
        %798 = vmatpush.msra.mxu0 %v783
        %799 = vmatpush.msra.mxu0 %v782
        %800 = vmatmul.f32.gmra.mxu0 %v407
        %v801 = vpop.f32.mrf.mxu0
        %v802 = vadd.f32 0.0, %v801
        %803 = vdwg.mxu0
        %v805 = vsel %vm433, %v802, 0
        %807 = vmatpush.msra.mxu0 0.0
        %808 = vmatpush.msra.mxu0 0.0
        %809 = vmatpush.msra.mxu0 0.0
        %810 = vmatpush.msra.mxu0 0.0
        %811 = vmatpush.msra.mxu0 0.0
        %812 = vmatpush.msra.mxu0 0.0
        %813 = vmatpush.msra.mxu0 0.0
        %814 = vmatpush.msra.mxu0 0.0
        %815 = vmatpush.msra.mxu0 0.0
        %816 = vmatpush.msra.mxu0 0.0
        %817 = vmatpush.msra.mxu0 0.0
        %818 = vmatpush.msra.mxu0 0.0
        %819 = vmatpush.msra.mxu0 0.0
        %820 = vmatpush.msra.mxu0 0.0
        %821 = vmatpush.msra.mxu0 0.0
        %822 = vmatpush.msra.mxu0 %v805
        %823 = vmatmul.f32.gmra.mxu0 %v431
        %v824 = vpop.f32.mrf.mxu0
        %v825 = vadd.f32 %v395, %v824
        %826 = vdwg.mxu0
        %v827 = vmax.f32 %v825, 0.0
        %v828 = vmax.f32 %v775, %v827
        %v829 = vld [vmem:[%s5] sm:$0xff]
        %v830 = vld [vmem:[%s6] sm:$0xff]
        %v832 = vsel %vm429, %v830, 0
        %v835 = vsel %vm433, %v828, 0
        %837 = vmatpush.msra.mxu0 0.0
        %838 = vmatpush.msra.mxu0 0.0
        %839 = vmatpush.msra.mxu0 0.0
        %840 = vmatpush.msra.mxu0 0.0
        %841 = vmatpush.msra.mxu0 0.0
        %842 = vmatpush.msra.mxu0 0.0
        %843 = vmatpush.msra.mxu0 0.0
        %844 = vmatpush.msra.mxu0 0.0
        %845 = vmatpush.msra.mxu0 0.0
        %846 = vmatpush.msra.mxu0 0.0
        %847 = vmatpush.msra.mxu0 0.0
        %848 = vmatpush.msra.mxu0 0.0
        %849 = vmatpush.msra.mxu0 0.0
        %850 = vmatpush.msra.mxu0 0.0
        %851 = vmatpush.msra.mxu0 0.0
        %852 = vmatpush.msra.mxu0 %v835
        %853 = vmatmul.f32.gmra.mxu0 %v832
        %v854 = vpop.f32.mrf.mxu0
        %v855 = vadd.f32 0.0, %v854
        %856 = vdwg.mxu0
        %v858 = vsel %vm429, %v829, 0
        %v861 = vsel %vm433, %v386, 0
        %863 = vmatpush.msra.mxu0 0.0
        %864 = vmatpush.msra.mxu0 0.0
        %865 = vmatpush.msra.mxu0 0.0
        %866 = vmatpush.msra.mxu0 0.0
        %867 = vmatpush.msra.mxu0 0.0
        %868 = vmatpush.msra.mxu0 0.0
        %869 = vmatpush.msra.mxu0 0.0
        %870 = vmatpush.msra.mxu0 0.0
        %871 = vmatpush.msra.mxu0 0.0
        %872 = vmatpush.msra.mxu0 0.0
        %873 = vmatpush.msra.mxu0 0.0
        %874 = vmatpush.msra.mxu0 0.0
        %875 = vmatpush.msra.mxu0 0.0
        %876 = vmatpush.msra.mxu0 0.0
        %877 = vmatpush.msra.mxu0 0.0
        %878 = vmatpush.msra.mxu0 %v861
        %879 = vmatmul.f32.gmra.mxu0 %v858
        %v880 = vpop.f32.mrf.mxu0
        %v881 = vadd.f32 %v855, %v880
        %882 = vdwg.mxu0
        %v883 = vld [vmem:[%s7] sm:$0xff]
        %885 = vset.pattern.permute.xlu0 0
        %886 = vperm.xlu0 %885, %v883
        %v887 = vpop.permute.xlu0 %886
        %v889 = vadd.f32 %v881, %v887
        %v890 = vmax.f32 %v889, 0.0
        %891 = vst.msk [vmem:[%s373] sm:$0xff] %vm405, %v890
        %s892 = sand.u32 %s234, 1
        %s893 = scalar_lea.sflag [#allocation4], %s892
        %s894 = sand.u32 %s234, 1
        %s895 = smul.addr %s894, 8
        %s896 = scalar_lea.vmem [#allocation5], %s895
        // Predicated region
        $region57: #{tpu_custom_call.1} parent=51 // pred_check
          %p897 = pneg %p244
        $region58: #{tpu_custom_call.1} parent=51 // pred_check_branch
          %899 = sbr.rel (%p897) target = $region60
        $region59: #{tpu_custom_call.1} parent=51 // pred_region
          %901 = vsyncadd %s893, 0
          %s902 = sadd.s32 %s30, %s29
          %s903 = smul.addr %s902, 8
          %s904 = scalar_lea.hbm %s8, %s903
          %s906 = sshll.u32 %s896, 4
          %s907 = int_to_ptr.vmem [resolvable:$true] %s906
          %s908 = sshll.u32 %s904, 4
          %s909 = int_to_ptr.hbm [resolvable:$true] %s908
          %911 = dma.vmem_to_hbm [thread:$0]  %s907, 128, %s909, %s893
        $region60: #{tpu_custom_call.1} parent=51 // pred_fallthru
          _
      $region52: #{tpu_custom_call.1} parent=5 // pred_fallthru
        _
      %p912 = scmp.le.s32.totalorder 2, %s20
      // Predicated region
      $region61: #{tpu_custom_call.1} parent=5 // pred_check
        %p913 = pneg %p912
      $region62: #{tpu_custom_call.1} parent=5 // pred_check_branch
        %915 = sbr.rel (%p913) target = $region64
      $region63: #{tpu_custom_call.1} parent=5 // pred_region
        %s916 = ssub.s32 %s20, 2
        // Predicated region
        $region65: #{tpu_custom_call.1} parent=63 // pred_check
          %p917 = pneg %p250
        $region66: #{tpu_custom_call.1} parent=63 // pred_check_branch
          %919 = sbr.rel (%p917) target = $region68
        $region67: #{tpu_custom_call.1} parent=63 // pred_region
          %s920 = sand.u32 %s235, 1
          %s921 = scalar_lea.sflag [#allocation4], %s920
          %s922 = sand.u32 %s235, 1
          %s923 = smul.addr %s922, 8
          %s924 = scalar_lea.vmem [#allocation5], %s923
          %926 = dma.done %s921, 128
        $region68: #{tpu_custom_call.1} parent=63 // pred_fallthru
          _
      $region64: #{tpu_custom_call.1} parent=5 // pred_fallthru
        _
    $region6: #{tpu_custom_call.1} parent=1 // loop_footer
      %s24 = sadd.s32 1, %s20
    $region7: #{tpu_custom_call.1} parent=1 // loop_footer_branch
      %19 = sbr.rel target = $region3
    $region8: #{tpu_custom_call.1} parent=1 // loop_exit
      _
    %927 = vsyncpa [#allocation3], 1
    %s928 = scalar_lea.sflag [#allocation3], 1
    %929 = vsyncpa %s928, 1
    %930 = vsyncpa [#allocation4], 1
    %s931 = scalar_lea.sflag [#allocation4], 1
    %932 = vsyncpa %s931, 1

</llo_original>
